<compile_context>
chip_gen: v5e
topology: v5e:2x2
jax: 0.10.0
libtpu: 0.0.40
codegen_flags: <defaults>
</compile_context>

<pallas_src>
import functools

import jax
import jax.numpy as jnp
from jax.experimental import pallas as pl
from jax.experimental.pallas import tpu as pltpu


def _round_up(x, m):
    return (x + m - 1) // m * m


def resblock1d_kernel(x_ref, w1_ref, w2_ref, o_ref, *, real_len):
    """One batch item.

    x_ref : (1, Cp, Lp)  NCL activations (channels on sublanes, length on lanes)
    w*_ref: (Cp, 3*Cp)   fused-tap weights, column index = k*Cp + cin (k = tap)
    o_ref : (1, Cp, Lp)
    """
    x = x_ref[0]                               # (Cp, Lp)
    cp, lp = x.shape
    L = real_len

    pos = jax.lax.broadcasted_iota(jnp.int32, (cp, lp), 1)
    not_first = pos != 0            # output col 0 has no left neighbour
    not_last = pos != (L - 1)       # output col L-1 has no right neighbour
    in_range = pos < L              # real (un-padded) columns

    def conv3(v, w_ref):
        # 1D conv (k=3, pad=1) as ONE MXU matmul:
        #   rhs rows [0:Cp]    = v shifted right by 1 (left neighbour,  tap 0)
        #   rhs rows [Cp:2Cp]  = v                    (centre,          tap 1)
        #   rhs rows [2Cp:3Cp] = v shifted left by 1  (right neighbour, tap 2)
        prev = jnp.where(not_first, pltpu.roll(v, 1, axis=1), 0.0)
        nxt = jnp.where(not_last, pltpu.roll(v, lp - 1, axis=1), 0.0)
        rhs = jnp.concatenate([prev, v, nxt], axis=0)          # (3*Cp, Lp)
        return jnp.dot(w_ref[...], rhs, preferred_element_type=jnp.float32)

    # conv1 + ReLU; zero padded tail columns so conv2's halo stays correct.
    h = jnp.where(in_range, jnp.maximum(conv3(x, w1_ref), 0.0), 0.0)
    # conv2 + ReLU + residual add.
    h2 = jnp.maximum(conv3(h.astype(x.dtype), w2_ref), 0.0)
    o_ref[0] = (h2 + x.astype(jnp.float32)).astype(o_ref.dtype)


def _prep_weight(w, cp):
    """(Cout, Cin, 3) nn.Conv1d weight -> (Cp, 3*Cp) fused-tap matmul LHS."""
    cout, cin, k = w.shape
    wt = jnp.transpose(w, (0, 2, 1))                       # (Cout, 3, Cin)
    wt = jnp.pad(wt, ((0, cp - cout), (0, 0), (0, cp - cin)))
    return wt.reshape(cp, k * cp)


def resblock1d_forward(x_ncl, w1, w2):
    """x_ncl: (N, C, L) like PyTorch.  w1, w2: (Cout, Cin, 3) like nn.Conv1d."""
    n, c, l = x_ncl.shape
    cp = _round_up(c, 8)            # sublane multiple
    lp = _round_up(l, 128)          # lane multiple -> lane-dense stores
    x_p = jnp.pad(x_ncl, ((0, 0), (0, cp - c), (0, lp - l)))
    # NOTE: in a real model these weight re-layouts are done once at init.
    w1_p = _prep_weight(w1, cp)
    w2_p = _prep_weight(w2, cp)

    # TODO(synk): for very long seq_len, tile L (1-column halo) and add a
    # parallel L-block grid axis to fit v7x's 64 MiB VMEM and feed both TCs.
    kernel = functools.partial(resblock1d_kernel, real_len=l)
    out_p = pl.pallas_call(
        kernel,
        out_shape=jax.ShapeDtypeStruct((n, cp, lp), x_ncl.dtype),
        grid_spec=pltpu.PrefetchScalarGridSpec(
            num_scalar_prefetch=0,
            grid=(n,),
            in_specs=[
                pl.BlockSpec((1, cp, lp), lambda b: (b, 0, 0)),
                pl.BlockSpec((cp, 3 * cp), lambda b: (0, 0)),
                pl.BlockSpec((cp, 3 * cp), lambda b: (0, 0)),
            ],
            out_specs=pl.BlockSpec((1, cp, lp), lambda b: (b, 0, 0)),
        ),
        compiler_params=pltpu.CompilerParams(
            dimension_semantics=("parallel",),
            vmem_limit_bytes=32 * 1024 * 1024,
        ),
    )(x_p, w1_p, w2_p)
    return out_p[:, :c, :l]


def _reference(x_ncl, w1, w2):
    """Pure-JAX reference using lax.conv (NCL, kernel (Cout, Cin, 3))."""
    dn = jax.lax.conv_dimension_numbers(x_ncl.shape, w1.shape,
                                        ("NCH", "OIH", "NCH"))
    h = jax.lax.conv_general_dilated(x_ncl, w1, (1,), [(1, 1)],
                                     dimension_numbers=dn)
    h = jnp.maximum(h, 0.0)
    h = jax.lax.conv_general_dilated(h, w2, (1,), [(1, 1)],
                                     dimension_numbers=dn)
    h = jnp.maximum(h, 0.0)
    return h + x_ncl


if __name__ == "__main__":
    # Small shapes consistent with ResBlock1D(inplanes=4, planes=4, seq_len=16)
    N, C, L = 2, 4, 16

    key = jax.random.PRNGKey(0)
    kx, kw1, kw2 = jax.random.split(key, 3)
    x = jax.random.normal(kx, (N, C, L), dtype=jnp.float32)
    # Deterministic synthetic weights, shapes as in nn.Conv1d(C, C, 3): (Cout, Cin, 3)
    w1 = jax.random.normal(kw1, (C, C, 3), dtype=jnp.float32) * 0.3
    w2 = jax.random.normal(kw2, (C, C, 3), dtype=jnp.float32) * 0.3

    fwd = jax.jit(resblock1d_forward)
    out = jax.block_until_ready(fwd(x, w1, w2))

    ref = jax.block_until_ready(_reference(x, w1, w2))
    assert out.shape == (N, C, L)
    assert jnp.allclose(out, ref, atol=1e-4, rtol=1e-4), "mismatch vs reference"

    print("KERNEL_OK")
</pallas_src>

<mosaic_0001>
module attributes {stable_mosaic.version = 11 : i64} {
  func.func @resblock1d_kernel(%arg0: i32, %arg1: memref<1x8x128xf32, #tpu.memory_space<vmem>>, %arg2: memref<8x24xf32, #tpu.memory_space<vmem>>, %arg3: memref<8x24xf32, #tpu.memory_space<vmem>>, %arg4: memref<1x8x128xf32, #tpu.memory_space<vmem>>) attributes {dimension_semantics = [#tpu.dimension_semantics<parallel>], iteration_bounds = array<i64: 2>, scalar_prefetch = 0 : i64, scratch_operands = 0 : i64, tpu.core_type = #tpu.core_type<tc>, window_params = [{transform_indices = @transform_0, window_bounds = array<i64: 1, 8, 128>}, {pipeline_mode = #tpu.pipeline_mode<synchronous>, transform_indices = @transform_1, window_bounds = array<i64: 8, 24>}, {pipeline_mode = #tpu.pipeline_mode<synchronous>, transform_indices = @transform_2, window_bounds = array<i64: 8, 24>}, {transform_indices = @transform_3, window_bounds = array<i64: 1, 8, 128>}]} {
    %c0 = arith.constant 0 : index
    %c0_0 = arith.constant 0 : index
    %c0_1 = arith.constant 0 : index
    %0 = vector.load %arg1[%c0, %c0_0, %c0_1] : memref<1x8x128xf32, #tpu.memory_space<vmem>>, vector<1x8x128xf32>
    %1 = vector.shape_cast %0 : vector<1x8x128xf32> to vector<8x128xf32>
    %2 = tpu.iota {dimensions = array<i32: 1>} : vector<8x128xi32>
    %c0_i32 = arith.constant 0 : i32
    %3 = vector.broadcast %c0_i32 : i32 to vector<8x128xi32>
    %4 = arith.cmpi ne, %2, %3 : vector<8x128xi32>
    %c15_i32 = arith.constant 15 : i32
    %5 = vector.broadcast %c15_i32 : i32 to vector<8x128xi32>
    %6 = arith.cmpi ne, %2, %5 : vector<8x128xi32>
    %c16_i32 = arith.constant 16 : i32
    %7 = vector.broadcast %c16_i32 : i32 to vector<8x128xi32>
    %8 = arith.cmpi slt, %2, %7 : vector<8x128xi32>
    %c1_i32 = arith.constant 1 : i32
    %9 = tpu.dynamic_rotate %1 by %c1_i32 dim 1 : vector<8x128xf32>, i32 -> vector<8x128xf32>
    %cst = arith.constant 0.000000e+00 : f32
    %10 = vector.broadcast %cst : f32 to vector<8x128xf32>
    %11 = arith.select %4, %9, %10 : vector<8x128xi1>, vector<8x128xf32>
    %c127_i32 = arith.constant 127 : i32
    %12 = tpu.dynamic_rotate %1 by %c127_i32 dim 1 : vector<8x128xf32>, i32 -> vector<8x128xf32>
    %cst_2 = arith.constant 0.000000e+00 : f32
    %13 = vector.broadcast %cst_2 : f32 to vector<8x128xf32>
    %14 = arith.select %6, %12, %13 : vector<8x128xi1>, vector<8x128xf32>
    %15 = tpu.concatenate %11, %1, %14 in 0 : vector<8x128xf32>, vector<8x128xf32>, vector<8x128xf32> -> vector<24x128xf32>
    %c0_3 = arith.constant 0 : index
    %c0_4 = arith.constant 0 : index
    %16 = vector.load %arg2[%c0_3, %c0_4] : memref<8x24xf32, #tpu.memory_space<vmem>>, vector<8x24xf32>
    %cst_5 = arith.constant dense<0.000000e+00> : vector<8x128xf32>
    %17 = tpu.matmul %16, %15, %cst_5 {dimension_numbers = #tpu.dot_dimension_numbers<[1], [0], [0], [1], [0, 0, 1, 1], [], []>} : vector<8x24xf32>, vector<24x128xf32>, vector<8x128xf32> -> vector<8x128xf32>
    %cst_6 = arith.constant 0.000000e+00 : f32
    %18 = vector.broadcast %cst_6 : f32 to vector<8x128xf32>
    %19 = arith.maximumf %17, %18 : vector<8x128xf32>
    %cst_7 = arith.constant 0.000000e+00 : f32
    %20 = vector.broadcast %cst_7 : f32 to vector<8x128xf32>
    %21 = arith.select %8, %19, %20 : vector<8x128xi1>, vector<8x128xf32>
    %c1_i32_8 = arith.constant 1 : i32
    %22 = tpu.dynamic_rotate %21 by %c1_i32_8 dim 1 : vector<8x128xf32>, i32 -> vector<8x128xf32>
    %cst_9 = arith.constant 0.000000e+00 : f32
    %23 = vector.broadcast %cst_9 : f32 to vector<8x128xf32>
    %24 = arith.select %4, %22, %23 : vector<8x128xi1>, vector<8x128xf32>
    %c127_i32_10 = arith.constant 127 : i32
    %25 = tpu.dynamic_rotate %21 by %c127_i32_10 dim 1 : vector<8x128xf32>, i32 -> vector<8x128xf32>
    %cst_11 = arith.constant 0.000000e+00 : f32
    %26 = vector.broadcast %cst_11 : f32 to vector<8x128xf32>
    %27 = arith.select %6, %25, %26 : vector<8x128xi1>, vector<8x128xf32>
    %28 = tpu.concatenate %24, %21, %27 in 0 : vector<8x128xf32>, vector<8x128xf32>, vector<8x128xf32> -> vector<24x128xf32>
    %c0_12 = arith.constant 0 : index
    %c0_13 = arith.constant 0 : index
    %29 = vector.load %arg3[%c0_12, %c0_13] : memref<8x24xf32, #tpu.memory_space<vmem>>, vector<8x24xf32>
    %cst_14 = arith.constant dense<0.000000e+00> : vector<8x128xf32>
    %30 = tpu.matmul %29, %28, %cst_14 {dimension_numbers = #tpu.dot_dimension_numbers<[1], [0], [0], [1], [0, 0, 1, 1], [], []>} : vector<8x24xf32>, vector<24x128xf32>, vector<8x128xf32> -> vector<8x128xf32>
    %cst_15 = arith.constant 0.000000e+00 : f32
    %31 = vector.broadcast %cst_15 : f32 to vector<8x128xf32>
    %32 = arith.maximumf %30, %31 : vector<8x128xf32>
    %33 = arith.addf %32, %1 : vector<8x128xf32>
    %c0_16 = arith.constant 0 : index
    %c0_17 = arith.constant 0 : index
    %c0_18 = arith.constant 0 : index
    %34 = vector.load %arg4[%c0_16, %c0_17, %c0_18] : memref<1x8x128xf32, #tpu.memory_space<vmem>>, vector<1x8x128xf32>
    %35 = vector.shape_cast %34 : vector<1x8x128xf32> to vector<8x128xf32>
    %36 = vector.shape_cast %33 : vector<8x128xf32> to vector<1x8x128xf32>
    tpu.vector_store %arg4[%c0_16, %c0_17, %c0_18], %36 {strides = array<i32>} : memref<1x8x128xf32, #tpu.memory_space<vmem>>, vector<1x8x128xf32>,
    return
  }
  func.func @transform_0(%arg0: i32) -> (i32, i32, i32) {
    %c0_i32 = arith.constant 0 : i32
    %c0_i32_0 = arith.constant 0 : i32
    %c0_i32_1 = arith.constant 0 : i32
    return %arg0, %c0_i32, %c0_i32_0 : i32, i32, i32
  }
  func.func @transform_1(%arg0: i32) -> (i32, i32) {
    %c0_i32 = arith.constant 0 : i32
    %c0_i32_0 = arith.constant 0 : i32
    %c0_i32_1 = arith.constant 0 : i32
    return %c0_i32, %c0_i32_0 : i32, i32
  }
  func.func @transform_2(%arg0: i32) -> (i32, i32) {
    %c0_i32 = arith.constant 0 : i32
    %c0_i32_0 = arith.constant 0 : i32
    %c0_i32_1 = arith.constant 0 : i32
    return %c0_i32, %c0_i32_0 : i32, i32
  }
  func.func @transform_3(%arg0: i32) -> (i32, i32, i32) {
    %c0_i32 = arith.constant 0 : i32
    %c0_i32_0 = arith.constant 0 : i32
    %c0_i32_1 = arith.constant 0 : i32
    return %arg0, %c0_i32, %c0_i32_0 : i32, i32, i32
  }
}

</mosaic_0001>

<llo_original>
// kernel: resblock1d_forward.1
$region0: #{resblock1d_forward.1}
  #allocation0 [shape = 'u32[]', space=smem, size = 0x4, offset = 0x4, fixed_abs, tag = 'smem constant byte address 0x4 - core index']
  #allocation1 [shape = 'u32[72,128]{1,0:T(1,128)}', space=vmem, size = 0x9000, scoped, tag = 'internal scratch']
  %s0 = inlined_call_operand.vmem [shape: f32[2,8,128], index: 0, kind: input, shape index: {}]
  %s1 = inlined_call_operand.vmem [shape: f32[8,24], index: 1, kind: input, shape index: {}]
  %s2 = inlined_call_operand.vmem [shape: f32[8,24], index: 2, kind: input, shape index: {}]
  %s3 = inlined_call_operand.vmem [shape: f32[2,8,128], index: 3, kind: output, shape index: {}]
  %s4 = sld [smem:[#allocation0]]
  $region45: #{resblock1d_forward.1} parent=0
    _
  %s6 = ssub.s32 1, %s4
  %s7 = scalar_select 0, %s6, %s4
  loop: start=0, step=1, limit=4
  $region2: #{resblock1d_forward.1} parent=0 // loop_pre_header
    _
  $region3: #{resblock1d_forward.1} parent=0 // loop_header
    %s9 = sphi 0, %s13
    %p10 = scmp.ge.s32.totalorder %s9, 4
    %s19 = sphi 0, %s21
    %s22 = sphi 0, %s19
    %s23 = sphi 0, %s22
    %s39 = sphi 0, %s23
    %s43 = sphi 0, %s43
    %s45 = sphi 0, %s43
    %s46 = sphi 0, %s45
    %s60 = sphi 0, %s46
    %s64 = sphi 0, %s64
    %s66 = sphi 0, %s64
    %s67 = sphi 0, %s66
    %s81 = sphi 0, %s67
    %s87 = sphi 0, %s89
    %s90 = sphi 0, %s87
    %s91 = sphi 0, %s90
    %s107 = sphi 0, %s91
  $region4: #{resblock1d_forward.1} parent=0 // loop_header_branch
    %12 = sbr.rel (%p10) target = $region8
  $region5: #{resblock1d_forward.1} parent=0 // loop_body
    %s14 = ssub.s32 %s9, 1
    %s15 = ssub.s32 %s9, 2
    %s16 = sadd.s32 %s9, 1
    %s17 = ssub.s32 %s9, %s16
    %p18 = scmp.eq.s32.totalorder %s17, 0
    %s20 = sadd.s32 %s19, 1
    %s21 = scalar_select %p18, %s19, %s20
    %p24 = pneg %p18
    %p25 = scmp.eq.s32.totalorder %s9, 1
    %p26 = por %p24, %p25
    %p27 = scmp.ne.s32.totalorder %s19, %s22
    %p28 = scmp.eq.s32.totalorder %s9, 0
    %p29 = por %p27, %p28
    %p30 = scmp.ne.s32.totalorder %s19, %s22
    %p31 = scmp.eq.s32.totalorder %s14, 1
    %p32 = por %p30, %p31
    %p33 = scmp.ne.s32.totalorder %s22, %s23
    %p34 = scmp.eq.s32.totalorder %s14, 0
    %p35 = por %p33, %p34
    %p36 = scmp.ne.s32.totalorder %s22, %s23
    %p37 = scmp.eq.s32.totalorder %s15, 1
    %p38 = por %p36, %p37
    %p40 = scmp.ne.s32.totalorder %s23, %s39
    %p41 = scmp.eq.s32.totalorder %s15, 0
    %p42 = por %p40, %p41
    %s44 = sadd.s32 %s43, 1
    %p47 = scmp.eq.s32.totalorder %s9, 1
    %p48 = scmp.ne.s32.totalorder %s43, %s45
    %p49 = scmp.eq.s32.totalorder %s9, 0
    %p50 = por %p48, %p49
    %p51 = scmp.ne.s32.totalorder %s43, %s45
    %p52 = scmp.eq.s32.totalorder %s14, 1
    %p53 = por %p51, %p52
    %p54 = scmp.ne.s32.totalorder %s45, %s46
    %p55 = scmp.eq.s32.totalorder %s14, 0
    %p56 = por %p54, %p55
    %p57 = scmp.ne.s32.totalorder %s45, %s46
    %p58 = scmp.eq.s32.totalorder %s15, 1
    %p59 = por %p57, %p58
    %p61 = scmp.ne.s32.totalorder %s46, %s60
    %p62 = scmp.eq.s32.totalorder %s15, 0
    %p63 = por %p61, %p62
    %s65 = sadd.s32 %s64, 1
    %p68 = scmp.eq.s32.totalorder %s9, 1
    %p69 = scmp.ne.s32.totalorder %s64, %s66
    %p70 = scmp.eq.s32.totalorder %s9, 0
    %p71 = por %p69, %p70
    %p72 = scmp.ne.s32.totalorder %s64, %s66
    %p73 = scmp.eq.s32.totalorder %s14, 1
    %p74 = por %p72, %p73
    %p75 = scmp.ne.s32.totalorder %s66, %s67
    %p76 = scmp.eq.s32.totalorder %s14, 0
    %p77 = por %p75, %p76
    %p78 = scmp.ne.s32.totalorder %s66, %s67
    %p79 = scmp.eq.s32.totalorder %s15, 1
    %p80 = por %p78, %p79
    %p82 = scmp.ne.s32.totalorder %s67, %s81
    %p83 = scmp.eq.s32.totalorder %s15, 0
    %p84 = por %p82, %p83
    %s85 = ssub.s32 %s9, %s16
    %p86 = scmp.eq.s32.totalorder %s85, 0
    %s88 = sadd.s32 %s87, 1
    %s89 = scalar_select %p86, %s87, %s88
    %p92 = pneg %p86
    %p93 = scmp.eq.s32.totalorder %s9, 1
    %p94 = por %p92, %p93
    %p95 = scmp.ne.s32.totalorder %s87, %s90
    %p96 = scmp.eq.s32.totalorder %s9, 0
    %p97 = por %p95, %p96
    %p98 = scmp.ne.s32.totalorder %s87, %s90
    %p99 = scmp.eq.s32.totalorder %s14, 1
    %p100 = por %p98, %p99
    %p101 = scmp.ne.s32.totalorder %s90, %s91
    %p102 = scmp.eq.s32.totalorder %s14, 0
    %p103 = por %p101, %p102
    %p104 = scmp.ne.s32.totalorder %s90, %s91
    %p105 = scmp.eq.s32.totalorder %s15, 1
    %p106 = por %p104, %p105
    %p108 = scmp.ne.s32.totalorder %s91, %s107
    %p109 = scmp.eq.s32.totalorder %s15, 0
    %p110 = por %p108, %p109
    %p111 = scmp.le.s32.totalorder 1, %s9
    %p112 = scmp.lt.s32.totalorder %s9, 3
    %p113 = pnand %p111, %p112
    %p114 = pneg %p113
    // Predicated region
    $region9: #{resblock1d_forward.1} parent=5 // pred_check
      _
    $region10: #{resblock1d_forward.1} parent=5 // pred_check_branch
      %116 = sbr.rel (%p113) target = $region12
    $region11: #{resblock1d_forward.1} parent=5 // pred_region
      %s117 = ssub.s32 %s9, 1
      // Predicated region
      $region13: #{resblock1d_forward.1} parent=11 // pred_check
        %p118 = pneg %p56
      $region14: #{resblock1d_forward.1} parent=11 // pred_check_branch
        %120 = sbr.rel (%p118) target = $region16
      $region15: #{resblock1d_forward.1} parent=11 // pred_region
        _
      $region16: #{resblock1d_forward.1} parent=11 // pred_fallthru
        _
      // Predicated region
      $region17: #{resblock1d_forward.1} parent=11 // pred_check
        %p121 = pneg %p77
      $region18: #{resblock1d_forward.1} parent=11 // pred_check_branch
        %123 = sbr.rel (%p121) target = $region20
      $region19: #{resblock1d_forward.1} parent=11 // pred_region
        _
      $region20: #{resblock1d_forward.1} parent=11 // pred_fallthru
        _
    $region12: #{resblock1d_forward.1} parent=5 // pred_fallthru
      _
    %p124 = scmp.lt.s32.totalorder %s9, 2
    // Predicated region
    $region21: #{resblock1d_forward.1} parent=5 // pred_check
      %p125 = pneg %p124
    $region22: #{resblock1d_forward.1} parent=5 // pred_check_branch
      %127 = sbr.rel (%p125) target = $region24
    $region23: #{resblock1d_forward.1} parent=5 // pred_region
      // Predicated region
      $region25: #{resblock1d_forward.1} parent=23 // pred_check
        %p128 = pneg %p29
      $region26: #{resblock1d_forward.1} parent=23 // pred_check_branch
        %130 = sbr.rel (%p128) target = $region28
      $region27: #{resblock1d_forward.1} parent=23 // pred_region
        %p131 = scmp.lt.s32.totalorder %s9, 1
        %s132 = scalar_select %p131, %s9, 1
        %s133 = smul.addr %s132, 8
        %s134 = scalar_lea.vmem %s0, %s133
      $region28: #{resblock1d_forward.1} parent=23 // pred_fallthru
        _
    $region24: #{resblock1d_forward.1} parent=5 // pred_fallthru
      _
    %p135 = scmp.le.s32.totalorder 1, %s9
    %p136 = scmp.lt.s32.totalorder %s9, 3
    %p137 = pnand %p135, %p136
    %p138 = pneg %p137
    // Predicated region
    $region29: #{resblock1d_forward.1} parent=5 // pred_check
      _
    $region30: #{resblock1d_forward.1} parent=5 // pred_check_branch
      %140 = sbr.rel (%p137) target = $region32
    $region31: #{resblock1d_forward.1} parent=5 // pred_region
      %s141 = ssub.s32 %s9, 1
      %p142 = scmp.lt.s32.totalorder %s14, 1
      %s143 = scalar_select %p142, %s14, 1
      %s144 = smul.addr %s143, 8
      %s145 = scalar_lea.vmem %s0, %s144
      %p146 = pneg %p35
      %p147 = pneg %p32
      %p148 = pneg %p56
      %p149 = pneg %p53
      %p150 = pneg %p77
      %p151 = pneg %p74
      %p152 = pneg %p103
      %p153 = pneg %p100
      %p154 = scmp.lt.s32.totalorder %s14, 1
      %s155 = scalar_select %p154, %s14, 1
      %s156 = smul.addr %s155, 8
      %s157 = scalar_lea.vmem %s3, %s156
      %p158 = scmp.lt.s32.totalorder %s14, 1
      %s159 = scalar_select %p158, %s14, 1
      %s160 = smul.addr %s159, 8
      %s161 = scalar_lea.vmem %s0, %s160
      %p162 = scmp.lt.s32.totalorder %s14, 1
      %s163 = scalar_select %p162, %s14, 1
      %s164 = smul.addr %s163, 8
      %s165 = scalar_lea.vmem %s3, %s164
      %v166 = vld [vmem:[%s161] sm:$0xff]
      %v167 = vlaneseq
      %v168 = vand.u32 %v167, 127
      %vm169 = vcmp.ne.s32.totalorder %v168, 0
      %vm170 = vcmp.ne.s32.totalorder %v168, 15
      %vm171 = vcmp.lt.s32.totalorder %v168, 16
      %172 = vrot.lane.b32.xlu0 %v166, 1
      %v173 = vpop.permute.xlu0 %172
      %v174 = vsel %vm169, %v173, 0.0
      %175 = vrot.lane.b32.xlu0 %v166, 127
      %v176 = vpop.permute.xlu0 %175
      %v177 = vsel %vm170, %v176, 0.0
      %v178 = vld [vmem:[%s1] sm:$0xff]
      %vm179 = vcmask 195584
      %v181 = vsel %vm179, %v178, 0
      %183 = vmatpush.msra.mxu0 0.0
      %184 = vmatpush.msra.mxu0 0.0
      %185 = vmatpush.msra.mxu0 0.0
      %186 = vmatpush.msra.mxu0 0.0
      %187 = vmatpush.msra.mxu0 0.0
      %188 = vmatpush.msra.mxu0 0.0
      %189 = vmatpush.msra.mxu0 0.0
      %190 = vmatpush.msra.mxu0 0.0
      %191 = vmatpush.msra.mxu0 0.0
      %192 = vmatpush.msra.mxu0 0.0
      %193 = vmatpush.msra.mxu0 0.0
      %194 = vmatpush.msra.mxu0 0.0
      %195 = vmatpush.msra.mxu0 0.0
      %196 = vmatpush.msra.mxu0 %v177
      %197 = vmatpush.msra.mxu0 %v166
      %198 = vmatpush.msra.mxu0 %v174
      %199 = vmatmul.f32.gmra.mxu0 %v181
      %v200 = vpop.f32.mrf.mxu0
      %v201 = vadd.f32 0.0, %v200
      %202 = vdwg.mxu0
      %v203 = vmax.f32 %v201, 0.0
      %v204 = vsel %vm171, %v203, 0.0
      %205 = vrot.lane.b32.xlu0 %v204, 1
      %v206 = vpop.permute.xlu0 %205
      %v207 = vsel %vm169, %v206, 0.0
      %208 = vrot.lane.b32.xlu0 %v204, 127
      %v209 = vpop.permute.xlu0 %208
      %v210 = vsel %vm170, %v209, 0.0
      %v211 = vld [vmem:[%s2] sm:$0xff]
      %v213 = vsel %vm179, %v211, 0
      %215 = vmatpush.msra.mxu0 0.0
      %216 = vmatpush.msra.mxu0 0.0
      %217 = vmatpush.msra.mxu0 0.0
      %218 = vmatpush.msra.mxu0 0.0
      %219 = vmatpush.msra.mxu0 0.0
      %220 = vmatpush.msra.mxu0 0.0
      %221 = vmatpush.msra.mxu0 0.0
      %222 = vmatpush.msra.mxu0 0.0
      %223 = vmatpush.msra.mxu0 0.0
      %224 = vmatpush.msra.mxu0 0.0
      %225 = vmatpush.msra.mxu0 0.0
      %226 = vmatpush.msra.mxu0 0.0
      %227 = vmatpush.msra.mxu0 0.0
      %228 = vmatpush.msra.mxu0 %v210
      %229 = vmatpush.msra.mxu0 %v204
      %230 = vmatpush.msra.mxu0 %v207
      %231 = vmatmul.f32.gmra.mxu0 %v213
      %v232 = vpop.f32.mrf.mxu0
      %v233 = vadd.f32 0.0, %v232
      %234 = vdwg.mxu0
      %v235 = vmax.f32 %v233, 0.0
      %v236 = vadd.f32 %v235, %v166
      %237 = vst [vmem:[%s165] sm:$0xff] %v236
      %p238 = scmp.lt.s32.totalorder %s14, 1
      %s239 = scalar_select %p238, %s14, 1
      %s240 = smul.addr %s239, 8
      %s241 = scalar_lea.vmem %s3, %s240
      // Predicated region
      $region33: #{resblock1d_forward.1} parent=31 // pred_check
        %p242 = pneg %p100
      $region34: #{resblock1d_forward.1} parent=31 // pred_check_branch
        %244 = sbr.rel (%p242) target = $region36
      $region35: #{resblock1d_forward.1} parent=31 // pred_region
        _
      $region36: #{resblock1d_forward.1} parent=31 // pred_fallthru
        _
    $region32: #{resblock1d_forward.1} parent=5 // pred_fallthru
      _
    %p245 = scmp.le.s32.totalorder 2, %s9
    // Predicated region
    $region37: #{resblock1d_forward.1} parent=5 // pred_check
      %p246 = pneg %p245
    $region38: #{resblock1d_forward.1} parent=5 // pred_check_branch
      %248 = sbr.rel (%p246) target = $region40
    $region39: #{resblock1d_forward.1} parent=5 // pred_region
      %s249 = ssub.s32 %s9, 2
      // Predicated region
      $region41: #{resblock1d_forward.1} parent=39 // pred_check
        %p250 = pneg %p106
      $region42: #{resblock1d_forward.1} parent=39 // pred_check_branch
        %252 = sbr.rel (%p250) target = $region44
      $region43: #{resblock1d_forward.1} parent=39 // pred_region
        %p253 = scmp.lt.s32.totalorder %s15, 1
        %s254 = scalar_select %p253, %s15, 1
        %s255 = smul.addr %s254, 8
        %s256 = scalar_lea.vmem %s3, %s255
      $region44: #{resblock1d_forward.1} parent=39 // pred_fallthru
        _
    $region40: #{resblock1d_forward.1} parent=5 // pred_fallthru
      _
  $region6: #{resblock1d_forward.1} parent=0 // loop_footer
    %s13 = sadd.s32 1, %s9
  $region7: #{resblock1d_forward.1} parent=0 // loop_footer_branch
    %8 = sbr.rel target = $region3
  $region8: #{resblock1d_forward.1} parent=0 // loop_exit
    _

</llo_original>
